<compile_context>
chip_gen: v7x
topology: tpu7x:2x2x1
jax: 0.10.0
libtpu: 0.0.40
codegen_flags: <defaults>
</compile_context>

<pallas_src>
import math

import jax
import jax.numpy as jnp
from jax.experimental import pallas as pl
from jax.experimental.pallas import tpu as pltpu

_LANES = 128
_MAX_ROW_TILE = 512  # 512 x 128 f32 = 256 KiB per block buffer


def _copy_kernel(x_ref, o_ref):
    # Forward pass of Controller: return x  (pure identity / copy)
    o_ref[...] = x_ref[...]


def _lane_dense_identity(x2d):
    """Identity copy of a (rows, 128) array, tiled along rows."""
    rows, lanes = x2d.shape
    tb = rows if rows <= _MAX_ROW_TILE else _MAX_ROW_TILE  # full block or 512-row tiles
    return pl.pallas_call(
        _copy_kernel,
        out_shape=jax.ShapeDtypeStruct((rows, lanes), x2d.dtype),
        grid=(pl.cdiv(rows, tb),),
        in_specs=[pl.BlockSpec((tb, lanes), lambda i: (i, 0))],
        out_specs=pl.BlockSpec((tb, lanes), lambda i: (i, 0)),
        input_output_aliases={0: 0},  # output aliases input: no extra HBM buffer
        compiler_params=pltpu.CompilerParams(
            dimension_semantics=("parallel",)),  # splits across TCs on v7x
    )(x2d)


def controller_forward(x):
    """Pallas implementation of Controller.forward (identity).

    NOTE: semantically this is `return x`; the kernel exists only to keep a
    Pallas boundary.  The aliased, lane-dense copy keeps it as close to free
    as a kernel can be.
    """
    orig_shape = x.shape
    total = x.size
    if total % _LANES == 0 and total > 0:
        rows = total // _LANES
        y2d = _lane_dense_identity(x.reshape(rows, _LANES))
        return y2d.reshape(orig_shape)
    # Fallback for shapes whose element count is not a multiple of 128:
    # single whole-array block copy (still aliased).
    return pl.pallas_call(
        _copy_kernel,
        out_shape=jax.ShapeDtypeStruct(x.shape, x.dtype),
        input_output_aliases={0: 0},
    )(x)


def init_controller_params(key):
    """Deterministic init mirroring nn.Linear(32, 3) (Kaiming-uniform style).

    These parameters are unused by forward(), exactly as in the PyTorch module.
    """
    in_features, out_features = 32, 3
    k_w, k_b = jax.random.split(key)
    bound = 1.0 / math.sqrt(in_features)
    w = jax.random.uniform(k_w, (out_features, in_features),
                           minval=-bound, maxval=bound, dtype=jnp.float32)
    b = jax.random.uniform(k_b, (out_features,),
                           minval=-bound, maxval=bound, dtype=jnp.float32)
    return {"fc_weight": w, "fc_bias": b}


if __name__ == "__main__":
    key = jax.random.PRNGKey(0)
    k_param, k_x = jax.random.split(key)

    # Parameters exist but are unused in forward, matching the PyTorch module.
    params = init_controller_params(k_param)

    # Small example input consistent with the module (Linear expects 32 feats).
    x = jax.random.normal(k_x, (8, 32), dtype=jnp.float32)
    # Regenerate the identical reference draw (robust even though the kernel
    # input is aliased/donated inside the pallas_call).
    x_expected = jax.random.normal(k_x, (8, 32), dtype=jnp.float32)

    y = jax.block_until_ready(controller_forward(x))

    assert y.shape == x_expected.shape and y.dtype == x_expected.dtype
    assert bool(jnp.allclose(y, x_expected)), "identity forward mismatch"
    print("KERNEL_OK")
</pallas_src>

<mosaic_0001>
module attributes {stable_mosaic.version = 11 : i64} {
  func.func @_copy_kernel(%arg0: i32, %arg1: memref<2x128xf32, #tpu.memory_space<vmem>>, %arg2: memref<2x128xf32, #tpu.memory_space<vmem>>) attributes {dimension_semantics = [#tpu.dimension_semantics<parallel>], iteration_bounds = array<i64: 1>, scalar_prefetch = 0 : i64, scratch_operands = 0 : i64, tpu.core_type = #tpu.core_type<tc>, window_params = [{transform_indices = @transform_0, window_bounds = array<i64: 2, 128>}, {transform_indices = @transform_1, window_bounds = array<i64: 2, 128>}]} {
    %c0 = arith.constant 0 : index
    %c0_0 = arith.constant 0 : index
    %0 = vector.load %arg1[%c0, %c0_0] : memref<2x128xf32, #tpu.memory_space<vmem>>, vector<2x128xf32>
    %c0_1 = arith.constant 0 : index
    %c0_2 = arith.constant 0 : index
    %1 = vector.load %arg2[%c0_1, %c0_2] : memref<2x128xf32, #tpu.memory_space<vmem>>, vector<2x128xf32>
    tpu.vector_store %arg2[%c0_1, %c0_2], %0 {strides = array<i32>} : memref<2x128xf32, #tpu.memory_space<vmem>>, vector<2x128xf32>,
    return
  }
  func.func @transform_0(%arg0: i32) -> (i32, i32) {
    %c0_i32 = arith.constant 0 : i32
    %c0_i32_0 = arith.constant 0 : i32
    return %arg0, %c0_i32 : i32, i32
  }
  func.func @transform_1(%arg0: i32) -> (i32, i32) {
    %c0_i32 = arith.constant 0 : i32
    %c0_i32_0 = arith.constant 0 : i32
    return %arg0, %c0_i32 : i32, i32
  }
}

</mosaic_0001>

<llo_original>
// kernel: tpu_custom_call.1
$region0: #{tpu_custom_call.1}
  #allocation0 [shape = 'u32[]', space=smem, size = 0x4, offset = 0x4, fixed_abs, tag = 'smem constant byte address 0x4 - core index']
  #allocation1 [shape = 'u32[144,128]{1,0:T(1,128)}', space=vmem, size = 0x12000, scoped, tag = 'internal scratch']
  %s0 = inlined_call_operand.hbm [shape: f32[2,128], index: 0, kind: input, shape index: {}, may-alias: {0,1}]
  %s1 = inlined_call_operand.hbm [shape: f32[2,128], index: 1, kind: output, shape index: {}, may-alias: {0,1}]
  %s2 = sld [smem:[#allocation0]]
  $region18: #{tpu_custom_call.1} parent=0
    _
  %s4 = ssub.s32 1, %s2
  %s5 = scalar_select 0, %s4, %s2
  $region1: #{tpu_custom_call.1} parent=0
    #allocation2 [shape = 'u8[1024]{0}', space=vmem, size = 0x400, scoped, tag = 'input window, operand 0, single buffered']
    #allocation3 [shape = 's32[1]{0}', space=sflag, size = 0x4, scoped, tag = 'scoped memory for tpu_custom_call.1']
    #allocation4 [shape = 's32[1]{0}', space=sflag, size = 0x4, scoped, tag = 'scoped memory for tpu_custom_call.1']
    #allocation5 [shape = 'u8[1024]{0}', space=vmem, size = 0x400, scoped, tag = 'output window, operand 0, single buffered']
    %6 = vsyncpa [#allocation3], 0
    %7 = vsyncpa [#allocation4], 0
    // Predicated region
    $region2: #{tpu_custom_call.1} parent=1 // pred_check
      _
    $region3: #{tpu_custom_call.1} parent=1 // pred_check_branch
      %9 = sbr.rel (0) target = $region5
    $region4: #{tpu_custom_call.1} parent=1 // pred_region
      %s11 = ssub.s32 32, 32
      %12 = vsyncadd [#allocation3], %s11
      %s14 = sshll.u32 [#allocation2], 4
      %s15 = int_to_ptr.vmem [resolvable:$true] %s14
      %17 = dma.hbm_to_vmem [thread:$0]  %s0, 32, %s15, [#allocation3]
    $region5: #{tpu_custom_call.1} parent=1 // pred_fallthru
      _
    // Predicated region
    $region6: #{tpu_custom_call.1} parent=1 // pred_check
      _
    $region7: #{tpu_custom_call.1} parent=1 // pred_check_branch
      %19 = sbr.rel (0) target = $region9
    $region8: #{tpu_custom_call.1} parent=1 // pred_region
      %20 = dma.done [#allocation3], 32
    $region9: #{tpu_custom_call.1} parent=1 // pred_fallthru
      _
    %v21 = vld [vmem:[#allocation2] sm:$0x3]
    %22 = vst [vmem:[#allocation5] sm:$0x3] %v21
    // Predicated region
    $region10: #{tpu_custom_call.1} parent=1 // pred_check
      _
    $region11: #{tpu_custom_call.1} parent=1 // pred_check_branch
      %24 = sbr.rel (0) target = $region13
    $region12: #{tpu_custom_call.1} parent=1 // pred_region
      %s26 = ssub.s32 32, 32
      %27 = vsyncadd [#allocation4], %s26
      %s29 = sshll.u32 [#allocation5], 4
      %s30 = int_to_ptr.vmem [resolvable:$true] %s29
      %32 = dma.vmem_to_hbm [thread:$0]  %s30, 32, %s1, [#allocation4]
    $region13: #{tpu_custom_call.1} parent=1 // pred_fallthru
      _
    // Predicated region
    $region14: #{tpu_custom_call.1} parent=1 // pred_check
      _
    $region15: #{tpu_custom_call.1} parent=1 // pred_check_branch
      %34 = sbr.rel (0) target = $region17
    $region16: #{tpu_custom_call.1} parent=1 // pred_region
      %35 = dma.done [#allocation4], 32
    $region17: #{tpu_custom_call.1} parent=1 // pred_fallthru
      _
    %36 = vsyncpa [#allocation3], 1
    %37 = vsyncpa [#allocation4], 1

</llo_original>
